<compile_context>
chip_gen: v7x
topology: tpu7x:2x2x1
jax: 0.10.0
libtpu: 0.0.40
codegen_flags: <defaults>
</compile_context>

<pallas_src>
import functools

import jax
import jax.numpy as jnp
from jax import lax
from jax.experimental import pallas as pl
from jax.experimental.pallas import tpu as pltpu


def _round_up(x, m):
    return ((x + m - 1) // m) * m


def _self_output_kernel(x_ref, res_ref, w_ref, p_ref, o_ref, *, eps, hidden):
    # x_ref:   (tm, H) row tile of hidden_states
    # res_ref: (tm, H) row tile of the residual input_tensor
    # w_ref:   (H, H)  dense weight as [in, out] (bf16 -> MXU operand)
    # p_ref:   (8, H)  packed f32 params: row0 = bias, row1 = gamma, row2 = beta
    # o_ref:   (tm, H) output tile

    w = w_ref[...]
    x = x_ref[...]
    if x.dtype != w.dtype:
        x = x.astype(w.dtype)          # bf16 MXU operand; no HBM round trip
    # Dense: bf16 MXU, f32 accumulator.
    y = jnp.dot(x, w, preferred_element_type=jnp.float32)

    bias = p_ref[0:1, :]
    gamma = p_ref[1:2, :]
    beta = p_ref[2:3, :]

    # Dropout: identity in eval mode.
    # TODO(synk): training-mode dropout (pltpu.prng_seed + prng_random_bits mask) not implemented.

    # Bias + residual add in f32.
    z = y + bias + res_ref[...].astype(jnp.float32)

    # Two-pass LayerNorm: mean, then centered variance (avoids E[z^2]-E[z]^2
    # cancellation).  Reductions ride the XLU; rsqrt rides the EUP.
    inv_h = jnp.float32(1.0 / hidden)
    mean = jnp.sum(z, axis=-1, keepdims=True) * inv_h
    zc = z - mean
    var = jnp.sum(zc * zc, axis=-1, keepdims=True) * inv_h
    norm = zc * lax.rsqrt(var + jnp.float32(eps))

    # Affine: in output dtype when sub-f32 (bf16 packs 2 elems/lane on v6e/v7x
    # and the final cast is needed anyway); full f32 when the output is f32.
    if jnp.dtype(o_ref.dtype).itemsize < 4:
        ad = o_ref.dtype
        out = norm.astype(ad) * gamma.astype(ad) + beta.astype(ad)
    else:
        out = norm * gamma + beta
    o_ref[...] = out.astype(o_ref.dtype)


def roberta_self_output(hidden_states, input_tensor, w_t, bias, gamma, beta,
                        *, eps=1e-5, tm=None, matmul_dtype=jnp.bfloat16):
    """hidden_states, input_tensor: [B, S, H]; w_t: [H, H] (= W.T); bias/gamma/beta: [H]."""
    B, S, H = hidden_states.shape
    M = B * S

    # Guarantee a bf16 MXU weight operand (one-time cast, amortized; avoids
    # multi-pass f32 MXU emulation and halves the resident-weight footprint).
    if matmul_dtype is not None and w_t.dtype != jnp.dtype(matmul_dtype):
        w_t = w_t.astype(matmul_dtype)

    # Row tile: large on HBM-bound big problems; for small M keep >=2 grid
    # steps so the "parallel" axis shards across both v7x TensorCores.
    if tm is None:
        if M >= 2048:
            tm = 512
        elif M >= 512:
            tm = 256
        else:
            tm = max(8, _round_up(pl.cdiv(M, 2), 8))
    tm = max(8, _round_up(min(tm, _round_up(M, 8)), 8))

    x_b = jnp.dtype(hidden_states.dtype).itemsize
    r_b = jnp.dtype(input_tensor.dtype).itemsize
    o_b = x_b
    w_b = jnp.dtype(w_t.dtype).itemsize

    def need_bytes(t):
        return (2 * t * H * x_b          # hidden tile, double-buffered
                + 2 * t * H * r_b        # residual tile, double-buffered
                + 2 * t * H * o_b        # output tile, double-buffered
                + 2 * H * H * w_b        # weight (counted double-buffered, conservative)
                + 2 * 8 * H * 4          # packed params
                + 3 * t * H * 4          # f32 epilogue temporaries (z, zc, out)
                + (2 << 20))             # headroom

    # Per-generation VMEM cap: v7x has 64 MiB physical per TC, v5e/v6e 128 MiB.
    try:
        cap = int(pltpu.get_tpu_info().vmem_capacity_bytes) - (16 << 20)
    except Exception:
        cap = 48 << 20
    cap = int(min(max(cap, 20 << 20), 96 << 20))

    while tm > 64 and need_bytes(tm) > cap:
        tm = max(64, _round_up(tm // 2, 8))

    # Always set the scoped limit (v5e default is only 16 MiB).
    vmem_limit = int(min(max(need_bytes(tm), 20 << 20), cap))

    x2 = hidden_states.reshape(M, H)
    r2 = input_tensor.reshape(M, H)

    # Pack bias / gamma / beta into a single f32 (8, H) param block (8 sublanes).
    params = jnp.zeros((8, H), dtype=jnp.float32)
    params = (params.at[0].set(bias.astype(jnp.float32))
                    .at[1].set(gamma.astype(jnp.float32))
                    .at[2].set(beta.astype(jnp.float32)))

    kernel = functools.partial(_self_output_kernel, eps=float(eps), hidden=H)
    grid = (pl.cdiv(M, tm),)   # boundary block handled by Pallas (masked store)

    out2 = pl.pallas_call(
        kernel,
        out_shape=jax.ShapeDtypeStruct((M, H), hidden_states.dtype),
        grid_spec=pltpu.PrefetchScalarGridSpec(
            num_scalar_prefetch=0,
            grid=grid,
            in_specs=[
                pl.BlockSpec((tm, H), lambda i: (i, 0)),   # hidden_states tile
                pl.BlockSpec((tm, H), lambda i: (i, 0)),   # residual tile
                pl.BlockSpec((H, H), lambda i: (0, 0)),    # dense weight (VMEM-resident)
                pl.BlockSpec((8, H), lambda i: (0, 0)),    # packed bias/gamma/beta
            ],
            out_specs=pl.BlockSpec((tm, H), lambda i: (i, 0)),
        ),
        compiler_params=pltpu.CompilerParams(
            dimension_semantics=("parallel",),
            vmem_limit_bytes=vmem_limit,
        ),
    )(x2, r2, w_t, params)

    return out2.reshape(B, S, H)


def reference(hidden_states, input_tensor, w_t, bias, gamma, beta, eps=1e-5,
              matmul_dtype=jnp.bfloat16):
    x = hidden_states
    w = w_t
    if matmul_dtype is not None:
        x = x.astype(matmul_dtype)
        w = w.astype(matmul_dtype)
    y = jnp.einsum("bsh,hk->bsk", x.astype(jnp.float32), w.astype(jnp.float32),
                   precision=lax.Precision.HIGHEST) + bias.astype(jnp.float32)
    z = y + input_tensor.astype(jnp.float32)
    mean = jnp.mean(z, axis=-1, keepdims=True)
    var = jnp.mean((z - mean) ** 2, axis=-1, keepdims=True)
    out = (z - mean) * lax.rsqrt(var + eps) * gamma + beta
    return out.astype(hidden_states.dtype)


if __name__ == "__main__":
    eps = 1e-5
    root = jax.random.PRNGKey(0)

    def run_case(B, S, H, key):
        k1, k2, k3, k4, k5, k6 = jax.random.split(key, 6)
        bound = 1.0 / (H ** 0.5)
        w = jax.random.uniform(k3, (H, H), minval=-bound, maxval=bound,
                               dtype=jnp.float32)   # PyTorch Linear weight [out, in]
        w_t = w.T                                   # kernel uses [in, out]
        bias = jax.random.uniform(k4, (H,), minval=-bound, maxval=bound,
                                  dtype=jnp.float32)
        gamma = 1.0 + 0.1 * jax.random.normal(k5, (H,), dtype=jnp.float32)
        beta = 0.1 * jax.random.normal(k6, (H,), dtype=jnp.float32)
        hs = jax.random.normal(k1, (B, S, H), dtype=jnp.float32)
        res = jax.random.normal(k2, (B, S, H), dtype=jnp.float32)

        out = jax.block_until_ready(
            roberta_self_output(hs, res, w_t, bias, gamma, beta, eps=eps))
        ref = reference(hs, res, w_t, bias, gamma, beta, eps=eps)
        assert out.shape == (B, S, H), f"bad shape for case {(B, S, H)}"
        assert bool(jnp.allclose(out, ref, atol=1e-3, rtol=1e-3)), \
            f"mismatch vs reference for case {(B, S, H)}"

    keys = jax.random.split(root, 3)
    run_case(2, 8, 32, keys[0])    # M=16: multi-step grid, tiles divide evenly
    run_case(1, 5, 32, keys[1])    # M=5:  single partial (masked) boundary block
    run_case(2, 13, 64, keys[2])   # M=26: multi-step grid with a boundary block

    print("KERNEL_OK")
</pallas_src>

<mosaic_0001>
module attributes {stable_mosaic.version = 11 : i64} {
  func.func @_self_output_kernel(%arg0: i32, %arg1: memref<8x32xf32, #tpu.memory_space<vmem>>, %arg2: memref<8x32xf32, #tpu.memory_space<vmem>>, %arg3: memref<32x32xbf16, #tpu.memory_space<vmem>>, %arg4: memref<8x32xf32, #tpu.memory_space<vmem>>, %arg5: memref<8x32xf32, #tpu.memory_space<vmem>>) attributes {dimension_semantics = [#tpu.dimension_semantics<parallel>], iteration_bounds = array<i64: 2>, scalar_prefetch = 0 : i64, scratch_operands = 0 : i64, tpu.core_type = #tpu.core_type<tc>, window_params = [{transform_indices = @transform_0, window_bounds = array<i64: 8, 32>}, {transform_indices = @transform_1, window_bounds = array<i64: 8, 32>}, {pipeline_mode = #tpu.pipeline_mode<synchronous>, transform_indices = @transform_2, window_bounds = array<i64: 32, 32>}, {pipeline_mode = #tpu.pipeline_mode<synchronous>, transform_indices = @transform_3, window_bounds = array<i64: 8, 32>}, {transform_indices = @transform_4, window_bounds = array<i64: 8, 32>}]} {
    %c0 = arith.constant 0 : index
    %c0_0 = arith.constant 0 : index
    %0 = vector.load %arg3[%c0, %c0_0] : memref<32x32xbf16, #tpu.memory_space<vmem>>, vector<32x32xbf16>
    %c0_1 = arith.constant 0 : index
    %c0_2 = arith.constant 0 : index
    %1 = vector.load %arg1[%c0_1, %c0_2] : memref<8x32xf32, #tpu.memory_space<vmem>>, vector<8x32xf32>
    %2 = arith.truncf %1 : vector<8x32xf32> to vector<8x32xbf16>
    %cst = arith.constant dense<0.000000e+00> : vector<8x32xf32>
    %3 = tpu.matmul %2, %0, %cst {dimension_numbers = #tpu.dot_dimension_numbers<[1], [0], [0], [1], [0, 0, 1, 1], [], []>} : vector<8x32xbf16>, vector<32x32xbf16>, vector<8x32xf32> -> vector<8x32xf32>
    %c0_3 = arith.constant 0 : index
    %c0_4 = arith.constant 0 : index
    %4 = vector.load %arg4[%c0_3, %c0_4] : memref<8x32xf32, #tpu.memory_space<vmem>>, vector<1x32xf32>
    %c1 = arith.constant 1 : index
    %c0_5 = arith.constant 0 : index
    %5 = vector.load %arg4[%c1, %c0_5] : memref<8x32xf32, #tpu.memory_space<vmem>>, vector<1x32xf32>
    %c2 = arith.constant 2 : index
    %c0_6 = arith.constant 0 : index
    %6 = vector.load %arg4[%c2, %c0_6] : memref<8x32xf32, #tpu.memory_space<vmem>>, vector<1x32xf32>
    %7 = vector.broadcast %4 : vector<1x32xf32> to vector<8x32xf32>
    %8 = arith.addf %3, %7 : vector<8x32xf32>
    %c0_7 = arith.constant 0 : index
    %c0_8 = arith.constant 0 : index
    %9 = vector.load %arg2[%c0_7, %c0_8] : memref<8x32xf32, #tpu.memory_space<vmem>>, vector<8x32xf32>
    %10 = arith.addf %8, %9 : vector<8x32xf32>
    %cst_9 = arith.constant dense<0.000000e+00> : vector<8xf32>
    %11 = vector.multi_reduction <add>, %10, %cst_9 [1] : vector<8x32xf32> to vector<8xf32>
    %12 = vector.shape_cast %11 : vector<8xf32> to vector<8x1xf32>
    %cst_10 = arith.constant 3.125000e-02 : f32
    %13 = vector.broadcast %cst_10 : f32 to vector<8x1xf32>
    %14 = arith.mulf %12, %13 : vector<8x1xf32>
    %15 = vector.broadcast %14 : vector<8x1xf32> to vector<8x32xf32>
    %16 = arith.subf %10, %15 : vector<8x32xf32>
    %17 = arith.mulf %16, %16 : vector<8x32xf32>
    %cst_11 = arith.constant dense<0.000000e+00> : vector<8xf32>
    %18 = vector.multi_reduction <add>, %17, %cst_11 [1] : vector<8x32xf32> to vector<8xf32>
    %19 = vector.shape_cast %18 : vector<8xf32> to vector<8x1xf32>
    %cst_12 = arith.constant 3.125000e-02 : f32
    %20 = vector.broadcast %cst_12 : f32 to vector<8x1xf32>
    %21 = arith.mulf %19, %20 : vector<8x1xf32>
    %cst_13 = arith.constant 9.99999974E-6 : f32
    %22 = vector.broadcast %cst_13 : f32 to vector<8x1xf32>
    %23 = arith.addf %21, %22 : vector<8x1xf32>
    %24 = math.rsqrt %23 : vector<8x1xf32>
    %25 = vector.broadcast %24 : vector<8x1xf32> to vector<8x32xf32>
    %26 = arith.mulf %16, %25 : vector<8x32xf32>
    %27 = vector.broadcast %5 : vector<1x32xf32> to vector<8x32xf32>
    %28 = arith.mulf %26, %27 : vector<8x32xf32>
    %29 = vector.broadcast %6 : vector<1x32xf32> to vector<8x32xf32>
    %30 = arith.addf %28, %29 : vector<8x32xf32>
    %c0_14 = arith.constant 0 : index
    %c0_15 = arith.constant 0 : index
    %31 = vector.load %arg5[%c0_14, %c0_15] : memref<8x32xf32, #tpu.memory_space<vmem>>, vector<8x32xf32>
    tpu.vector_store %arg5[%c0_14, %c0_15], %30 {strides = array<i32>} : memref<8x32xf32, #tpu.memory_space<vmem>>, vector<8x32xf32>,
    return
  }
  func.func @transform_0(%arg0: i32) -> (i32, i32) {
    %c0_i32 = arith.constant 0 : i32
    %c0_i32_0 = arith.constant 0 : i32
    return %arg0, %c0_i32 : i32, i32
  }
  func.func @transform_1(%arg0: i32) -> (i32, i32) {
    %c0_i32 = arith.constant 0 : i32
    %c0_i32_0 = arith.constant 0 : i32
    return %arg0, %c0_i32 : i32, i32
  }
  func.func @transform_2(%arg0: i32) -> (i32, i32) {
    %c0_i32 = arith.constant 0 : i32
    %c0_i32_0 = arith.constant 0 : i32
    %c0_i32_1 = arith.constant 0 : i32
    return %c0_i32, %c0_i32_0 : i32, i32
  }
  func.func @transform_3(%arg0: i32) -> (i32, i32) {
    %c0_i32 = arith.constant 0 : i32
    %c0_i32_0 = arith.constant 0 : i32
    %c0_i32_1 = arith.constant 0 : i32
    return %c0_i32, %c0_i32_0 : i32, i32
  }
  func.func @transform_4(%arg0: i32) -> (i32, i32) {
    %c0_i32 = arith.constant 0 : i32
    %c0_i32_0 = arith.constant 0 : i32
    return %arg0, %c0_i32 : i32, i32
  }
}

</mosaic_0001>

<llo_original>
// kernel: tpu_custom_call.1
$region0: #{tpu_custom_call.1}
  #allocation0 [shape = 'u32[]', space=smem, size = 0x4, offset = 0x4, fixed_abs, tag = 'smem constant byte address 0x4 - core index']
  #allocation1 [shape = 'u32[144,128]{1,0:T(1,128)}', space=vmem, size = 0x12000, scoped, tag = 'internal scratch']
  %s0 = inlined_call_operand.hbm [shape: f32[16,32], index: 0, kind: input, shape index: {}]
  %s1 = inlined_call_operand.hbm [shape: f32[16,32], index: 1, kind: input, shape index: {}]
  %s2 = inlined_call_operand.hbm [shape: bf16[32,32], index: 2, kind: input, shape index: {}]
  %s3 = inlined_call_operand.vmem [shape: f32[8,32], index: 3, kind: input, shape index: {}]
  %s4 = inlined_call_operand.hbm [shape: f32[16,32], index: 4, kind: output, shape index: {}]
  %s5 = sld [smem:[#allocation0]]
  $region61: #{tpu_custom_call.1} parent=0
    _
  %s7 = ssub.s32 1, %s5
  %s8 = scalar_select 0, %s7, %s5
  $region1: #{tpu_custom_call.1} parent=0
    #allocation2 [shape = 'u8[8192]{0}', space=vmem, size = 0x2000, scoped, tag = 'input window, operand 0']
    #allocation3 [shape = 's32[2]{0}', space=sflag, size = 0x8, scoped, tag = 'scoped memory for tpu_custom_call.1']
    #allocation4 [shape = 's32[2]{0}', space=sflag, size = 0x8, scoped, tag = 'scoped memory for tpu_custom_call.1']
    #allocation5 [shape = 'u8[8192]{0}', space=vmem, size = 0x2000, scoped, tag = 'input window, operand 1']
    #allocation6 [shape = 's32[2]{0}', space=sflag, size = 0x8, scoped, tag = 'scoped memory for tpu_custom_call.1']
    #allocation7 [shape = 'u8[8192]{0}', space=vmem, size = 0x2000, scoped, tag = 'input window, operand 2, single buffered']
    #allocation8 [shape = 'u8[8192]{0}', space=vmem, size = 0x2000, scoped, tag = 'output window, operand 0']
    %9 = vsyncpa [#allocation3], 0
    %s10 = scalar_lea.sflag [#allocation3], 1
    %11 = vsyncpa %s10, 0
    %12 = vsyncpa [#allocation6], 0
    %s13 = scalar_lea.sflag [#allocation6], 1
    %14 = vsyncpa %s13, 0
    %15 = vsyncpa [#allocation4], 0
    %s16 = scalar_lea.sflag [#allocation4], 1
    %17 = vsyncpa %s16, 0
    loop: start=0, step=1, limit=4
    $region2: #{tpu_custom_call.1} parent=1 // loop_pre_header
      _
    $region3: #{tpu_custom_call.1} parent=1 // loop_header
      %s19 = sphi 0, %s23
      %p20 = scmp.ge.s32.totalorder %s19, 4
      %s29 = sphi 0, %s31
      %s32 = sphi 0, %s29
      %s33 = sphi 0, %s32
      %s49 = sphi 0, %s33
      %s55 = sphi 0, %s57
      %s58 = sphi 0, %s55
      %s59 = sphi 0, %s58
      %s75 = sphi 0, %s59
      %s79 = sphi 0, %s79
      %s81 = sphi 0, %s79
      %s82 = sphi 0, %s81
      %s96 = sphi 0, %s82
      %s100 = sphi 0, %s100
      %s102 = sphi 0, %s100
      %s103 = sphi 0, %s102
      %s117 = sphi 0, %s103
      %s123 = sphi 0, %s125
      %s126 = sphi 0, %s123
      %s127 = sphi 0, %s126
      %s143 = sphi 0, %s127
    $region4: #{tpu_custom_call.1} parent=1 // loop_header_branch
      %22 = sbr.rel (%p20) target = $region8
    $region5: #{tpu_custom_call.1} parent=1 // loop_body
      %s24 = ssub.s32 %s19, 1
      %s25 = ssub.s32 %s19, 2
      %s26 = sadd.s32 %s19, 1
      %s27 = ssub.s32 %s19, %s26
      %p28 = scmp.eq.s32.totalorder %s27, 0
      %s30 = sadd.s32 %s29, 1
      %s31 = scalar_select %p28, %s29, %s30
      %p34 = pneg %p28
      %p35 = scmp.eq.s32.totalorder %s19, 1
      %p36 = por %p34, %p35
      %p37 = scmp.ne.s32.totalorder %s29, %s32
      %p38 = scmp.eq.s32.totalorder %s19, 0
      %p39 = por %p37, %p38
      %p40 = scmp.ne.s32.totalorder %s29, %s32
      %p41 = scmp.eq.s32.totalorder %s24, 1
      %p42 = por %p40, %p41
      %p43 = scmp.ne.s32.totalorder %s32, %s33
      %p44 = scmp.eq.s32.totalorder %s24, 0
      %p45 = por %p43, %p44
      %p46 = scmp.ne.s32.totalorder %s32, %s33
      %p47 = scmp.eq.s32.totalorder %s25, 1
      %p48 = por %p46, %p47
      %p50 = scmp.ne.s32.totalorder %s33, %s49
      %p51 = scmp.eq.s32.totalorder %s25, 0
      %p52 = por %p50, %p51
      %s53 = ssub.s32 %s19, %s26
      %p54 = scmp.eq.s32.totalorder %s53, 0
      %s56 = sadd.s32 %s55, 1
      %s57 = scalar_select %p54, %s55, %s56
      %p60 = pneg %p54
      %p61 = scmp.eq.s32.totalorder %s19, 1
      %p62 = por %p60, %p61
      %p63 = scmp.ne.s32.totalorder %s55, %s58
      %p64 = scmp.eq.s32.totalorder %s19, 0
      %p65 = por %p63, %p64
      %p66 = scmp.ne.s32.totalorder %s55, %s58
      %p67 = scmp.eq.s32.totalorder %s24, 1
      %p68 = por %p66, %p67
      %p69 = scmp.ne.s32.totalorder %s58, %s59
      %p70 = scmp.eq.s32.totalorder %s24, 0
      %p71 = por %p69, %p70
      %p72 = scmp.ne.s32.totalorder %s58, %s59
      %p73 = scmp.eq.s32.totalorder %s25, 1
      %p74 = por %p72, %p73
      %p76 = scmp.ne.s32.totalorder %s59, %s75
      %p77 = scmp.eq.s32.totalorder %s25, 0
      %p78 = por %p76, %p77
      %s80 = sadd.s32 %s79, 1
      %p83 = scmp.eq.s32.totalorder %s19, 1
      %p84 = scmp.ne.s32.totalorder %s79, %s81
      %p85 = scmp.eq.s32.totalorder %s19, 0
      %p86 = por %p84, %p85
      %p87 = scmp.ne.s32.totalorder %s79, %s81
      %p88 = scmp.eq.s32.totalorder %s24, 1
      %p89 = por %p87, %p88
      %p90 = scmp.ne.s32.totalorder %s81, %s82
      %p91 = scmp.eq.s32.totalorder %s24, 0
      %p92 = por %p90, %p91
      %p93 = scmp.ne.s32.totalorder %s81, %s82
      %p94 = scmp.eq.s32.totalorder %s25, 1
      %p95 = por %p93, %p94
      %p97 = scmp.ne.s32.totalorder %s82, %s96
      %p98 = scmp.eq.s32.totalorder %s25, 0
      %p99 = por %p97, %p98
      %s101 = sadd.s32 %s100, 1
      %p104 = scmp.eq.s32.totalorder %s19, 1
      %p105 = scmp.ne.s32.totalorder %s100, %s102
      %p106 = scmp.eq.s32.totalorder %s19, 0
      %p107 = por %p105, %p106
      %p108 = scmp.ne.s32.totalorder %s100, %s102
      %p109 = scmp.eq.s32.totalorder %s24, 1
      %p110 = por %p108, %p109
      %p111 = scmp.ne.s32.totalorder %s102, %s103
      %p112 = scmp.eq.s32.totalorder %s24, 0
      %p113 = por %p111, %p112
      %p114 = scmp.ne.s32.totalorder %s102, %s103
      %p115 = scmp.eq.s32.totalorder %s25, 1
      %p116 = por %p114, %p115
      %p118 = scmp.ne.s32.totalorder %s103, %s117
      %p119 = scmp.eq.s32.totalorder %s25, 0
      %p120 = por %p118, %p119
      %s121 = ssub.s32 %s19, %s26
      %p122 = scmp.eq.s32.totalorder %s121, 0
      %s124 = sadd.s32 %s123, 1
      %s125 = scalar_select %p122, %s123, %s124
      %p128 = pneg %p122
      %p129 = scmp.eq.s32.totalorder %s19, 1
      %p130 = por %p128, %p129
      %p131 = scmp.ne.s32.totalorder %s123, %s126
      %p132 = scmp.eq.s32.totalorder %s19, 0
      %p133 = por %p131, %p132
      %p134 = scmp.ne.s32.totalorder %s123, %s126
      %p135 = scmp.eq.s32.totalorder %s24, 1
      %p136 = por %p134, %p135
      %p137 = scmp.ne.s32.totalorder %s126, %s127
      %p138 = scmp.eq.s32.totalorder %s24, 0
      %p139 = por %p137, %p138
      %p140 = scmp.ne.s32.totalorder %s126, %s127
      %p141 = scmp.eq.s32.totalorder %s25, 1
      %p142 = por %p140, %p141
      %p144 = scmp.ne.s32.totalorder %s127, %s143
      %p145 = scmp.eq.s32.totalorder %s25, 0
      %p146 = por %p144, %p145
      %p147 = scmp.le.s32.totalorder 1, %s19
      %p148 = scmp.lt.s32.totalorder %s19, 3
      %p149 = pnand %p147, %p148
      %p150 = pneg %p149
      // Predicated region
      $region9: #{tpu_custom_call.1} parent=5 // pred_check
        _
      $region10: #{tpu_custom_call.1} parent=5 // pred_check_branch
        %152 = sbr.rel (%p149) target = $region12
      $region11: #{tpu_custom_call.1} parent=5 // pred_region
        %s153 = ssub.s32 %s19, 1
        // Predicated region
        $region13: #{tpu_custom_call.1} parent=11 // pred_check
          %p154 = pneg %p92
        $region14: #{tpu_custom_call.1} parent=11 // pred_check_branch
          %156 = sbr.rel (%p154) target = $region16
        $region15: #{tpu_custom_call.1} parent=11 // pred_region
          %s158 = ssub.s32 256, 256
          %159 = vsyncadd [#allocation6], %s158
          %s160 = sshll.u32 [#allocation7], 4
          %s161 = int_to_ptr.vmem [resolvable:$true] %s160
          %166 = dma.hbm_to_vmem [thread:$0]  %s2, 256, %s161, [#allocation6], 64, 64, 4
        $region16: #{tpu_custom_call.1} parent=11 // pred_fallthru
          _
        // Predicated region
        $region17: #{tpu_custom_call.1} parent=11 // pred_check
          %p167 = pneg %p113
        $region18: #{tpu_custom_call.1} parent=11 // pred_check_branch
          %169 = sbr.rel (%p167) target = $region20
        $region19: #{tpu_custom_call.1} parent=11 // pred_region
          _
        $region20: #{tpu_custom_call.1} parent=11 // pred_fallthru
          _
      $region12: #{tpu_custom_call.1} parent=5 // pred_fallthru
        _
      %p170 = scmp.lt.s32.totalorder %s19, 2
      // Predicated region
      $region21: #{tpu_custom_call.1} parent=5 // pred_check
        %p171 = pneg %p170
      $region22: #{tpu_custom_call.1} parent=5 // pred_check_branch
        %173 = sbr.rel (%p171) target = $region24
      $region23: #{tpu_custom_call.1} parent=5 // pred_region
        // Predicated region
        $region25: #{tpu_custom_call.1} parent=23 // pred_check
          %p174 = pneg %p39
        $region26: #{tpu_custom_call.1} parent=23 // pred_check_branch
          %176 = sbr.rel (%p174) target = $region28
        $region27: #{tpu_custom_call.1} parent=23 // pred_region
          %s177 = sand.u32 %s29, 1
          %s178 = scalar_lea.sflag [#allocation3], %s177
          %s179 = sand.u32 %s29, 1
          %s180 = smul.addr %s179, 8
          %s181 = scalar_lea.vmem [#allocation2], %s180
          %s183 = ssub.s32 128, 128
          %184 = vsyncadd %s178, %s183
          %s185 = smul.addr %s19, 128
          %s186 = scalar_lea.hbm %s0, %s185
          %s188 = sshll.u32 %s181, 4
          %s189 = int_to_ptr.vmem [resolvable:$true] %s188
          %191 = dma.hbm_to_vmem [thread:$0]  %s186, 128, %s189, %s178
        $region28: #{tpu_custom_call.1} parent=23 // pred_fallthru
          _
        // Predicated region
        $region29: #{tpu_custom_call.1} parent=23 // pred_check
          %p192 = pneg %p65
        $region30: #{tpu_custom_call.1} parent=23 // pred_check_branch
          %194 = sbr.rel (%p192) target = $region32
        $region31: #{tpu_custom_call.1} parent=23 // pred_region
          %s195 = sand.u32 %s19, 1
          %s196 = scalar_lea.sflag [#allocation6], %s195
          %s197 = sand.u32 %s55, 1
          %s198 = smul.addr %s197, 8
          %s199 = scalar_lea.vmem [#allocation5], %s198
          %s201 = ssub.s32 128, 128
          %202 = vsyncadd %s196, %s201
          %s203 = smul.addr %s19, 128
          %s204 = scalar_lea.hbm %s1, %s203
          %s206 = sshll.u32 %s199, 4
          %s207 = int_to_ptr.vmem [resolvable:$true] %s206
          %209 = dma.hbm_to_vmem [thread:$0]  %s204, 128, %s207, %s196
        $region32: #{tpu_custom_call.1} parent=23 // pred_fallthru
          _
      $region24: #{tpu_custom_call.1} parent=5 // pred_fallthru
        _
      %p210 = scmp.le.s32.totalorder 1, %s19
      %p211 = scmp.lt.s32.totalorder %s19, 3
      %p212 = pnand %p210, %p211
      %p213 = pneg %p212
      // Predicated region
      $region33: #{tpu_custom_call.1} parent=5 // pred_check
        _
      $region34: #{tpu_custom_call.1} parent=5 // pred_check_branch
        %215 = sbr.rel (%p212) target = $region36
      $region35: #{tpu_custom_call.1} parent=5 // pred_region
        %s216 = ssub.s32 %s19, 1
        %s217 = sand.u32 %s32, 1
        %s218 = scalar_lea.sflag [#allocation3], %s217
        %s219 = sand.u32 %s32, 1
        %s220 = smul.addr %s219, 8
        %s221 = scalar_lea.vmem [#allocation2], %s220
        // Predicated region
        $region37: #{tpu_custom_call.1} parent=35 // pred_check
          %p222 = pneg %p45
        $region38: #{tpu_custom_call.1} parent=35 // pred_check_branch
          %224 = sbr.rel (%p222) target = $region40
        $region39: #{tpu_custom_call.1} parent=35 // pred_region
          %225 = dma.done %s218, 128
        $region40: #{tpu_custom_call.1} parent=35 // pred_fallthru
          _
        %s226 = sand.u32 %s24, 1
        %s227 = scalar_lea.sflag [#allocation6], %s226
        %s228 = sand.u32 %s58, 1
        %s229 = smul.addr %s228, 8
        %s230 = scalar_lea.vmem [#allocation5], %s229
        // Predicated region
        $region41: #{tpu_custom_call.1} parent=35 // pred_check
          %p231 = pneg %p71
        $region42: #{tpu_custom_call.1} parent=35 // pred_check_branch
          %233 = sbr.rel (%p231) target = $region44
        $region43: #{tpu_custom_call.1} parent=35 // pred_region
          %234 = dma.done %s227, 128
        $region44: #{tpu_custom_call.1} parent=35 // pred_fallthru
          _
        // Predicated region
        $region45: #{tpu_custom_call.1} parent=35 // pred_check
          %p235 = pneg %p92
        $region46: #{tpu_custom_call.1} parent=35 // pred_check_branch
          %237 = sbr.rel (%p235) target = $region48
        $region47: #{tpu_custom_call.1} parent=35 // pred_region
          %238 = dma.done [#allocation6], 256
        $region48: #{tpu_custom_call.1} parent=35 // pred_fallthru
          _
        %s239 = sand.u32 %s32, 1
        %s240 = scalar_lea.sflag [#allocation3], %s239
        %s241 = sand.u32 %s32, 1
        %s242 = smul.addr %s241, 8
        %s243 = scalar_lea.vmem [#allocation2], %s242
        %p244 = pneg %p45
        %p245 = pneg %p42
        %s246 = sand.u32 %s24, 1
        %s247 = scalar_lea.sflag [#allocation6], %s246
        %s248 = sand.u32 %s58, 1
        %s249 = smul.addr %s248, 8
        %s250 = scalar_lea.vmem [#allocation5], %s249
        %p251 = pneg %p71
        %p252 = pneg %p68
        %p253 = pneg %p92
        %p254 = pneg %p89
        %p255 = pneg %p113
        %p256 = pneg %p110
        %p257 = pneg %p139
        %p258 = pneg %p136
        %s259 = sand.u32 %s126, 1
        %s260 = scalar_lea.sflag [#allocation4], %s259
        %s261 = sand.u32 %s126, 1
        %s262 = smul.addr %s261, 8
        %s263 = scalar_lea.vmem [#allocation8], %s262
        %v265 = vld [vmem:[#allocation7] sm:$0xf]
        %v266 = vld [vmem:[#allocation7 + $0x4] sm:$0xf]
        %v267 = vld [vmem:[#allocation7 + $0x8] sm:$0xf]
        %v268 = vld [vmem:[#allocation7 + $0xc] sm:$0xf]
        %v269 = vld [vmem:[%s221] sm:$0xff]
        %v270 = vpack.c.bf16 %v269, %v269
        %v271 = vld [vmem:[%s3] sm:$0x1]
        %v272 = vld [vmem:[%s3 + $0x1] sm:$0x1]
        %v273 = vld [vmem:[%s3 + $0x2] sm:$0x1]
        %v274 = vlaneseq
        %v275 = vshrl.u32 %v274, 7
        %v276 = vsub.s32 0, %v275
        %v277 = vrot.slane %v271, %v276
        %v282 = vunpack.c.l.b16 %v265
        %v283 = vunpack.c.l.b16 %v266
        %v284 = vunpack.c.l.b16 %v267
        %v285 = vunpack.c.l.b16 %v268
        %v286 = vpack.c.b16 %v283, %v282
        %v287 = vpack.c.b16 %v285, %v284
        %vm290 = vcmask 261120
        %v292 = vsel %vm290, %v270, 0
        %294 = vmatprep.subr.bf16.mxu0 0
        %295 = vmatpush1.bf16.msra.mxu0 %v286
        %296 = vmatprep.subr.bf16.mxu0 0
        %297 = vmatpush1.bf16.msra.mxu0 %v287
        %298 = vmatprep.subr.bf16.mxu0 0
        %299 = vmatpush1.bf16.msra.mxu0 0
        %300 = vmatprep.subr.bf16.mxu0 0
        %301 = vmatpush1.bf16.msra.mxu0 0
        %302 = vmatprep.subr.bf16.mxu0 0
        %303 = vmatpush1.bf16.msra.mxu0 0
        %304 = vmatprep.subr.bf16.mxu0 0
        %305 = vmatpush1.bf16.msra.mxu0 0
        %306 = vmatprep.subr.bf16.mxu0 0
        %307 = vmatpush1.bf16.msra.mxu0 0
        %308 = vmatprep.subr.bf16.mxu0 0
        %309 = vmatpush1.bf16.msra.mxu0 0
        %310 = vmatprep.subr.bf16.mxu0 0
        %311 = vmatpush1.bf16.msra.mxu0 0
        %312 = vmatprep.subr.bf16.mxu0 0
        %313 = vmatpush1.bf16.msra.mxu0 0
        %314 = vmatprep.subr.bf16.mxu0 0
        %315 = vmatpush1.bf16.msra.mxu0 0
        %316 = vmatprep.subr.bf16.mxu0 0
        %317 = vmatpush1.bf16.msra.mxu0 0
        %318 = vmatprep.subr.bf16.mxu0 0
        %319 = vmatpush1.bf16.msra.mxu0 0
        %320 = vmatprep.subr.bf16.mxu0 0
        %321 = vmatpush1.bf16.msra.mxu0 0
        %322 = vmatprep.subr.bf16.mxu0 0
        %323 = vmatpush1.bf16.msra.mxu0 0
        %324 = vmatprep.subr.bf16.mxu0 0
        %325 = vmatpush1.bf16.msra.mxu0 0
        %326 = vmatprep.mubr.bf16.mxu0 0
        %327 = vmatmul.mubr.bf16.gmra.mrb[0].mxu0 %v292
        %v328 = vpop.f32.mrb[0].mxu0
        %v329 = vadd.f32 %v277, %v328
        %v330 = vpop.f32.mrb[0].mxu0
        %v331 = vpop.f32.mrb[0].mxu0
        %v332 = vpop.f32.mrb[0].mxu0
        %333 = vdwg.mxu0
        %v334 = vld [vmem:[%s230] sm:$0xff]
        %v335 = vadd.f32 %v329, %v334
        %v336 = vsel %vm290, %v335, 0.0
        %337 = vadd.xlane.f32.xlu0 %v336
        %v338 = vpop.xlane.xlu0 %337
        %v339 = vmul.f32 %v338, 0.03125
        %v340 = vsub.f32 %v335, %v339
        %v341 = vmul.f32 %v340, %v340
        %v342 = vsel %vm290, %v341, 0.0
        %343 = vadd.xlane.f32.xlu0 %v342
        %v344 = vpop.xlane.xlu0 %343
        %v345 = vmul.f32 %v344, 0.03125
        %v346 = vadd.f32 %v345, 1e-05
        %v347 = vrsqrt.pop %v346
        %v348 = vmul.f32 %v340, %v347
        %v349 = vlaneseq
        %v350 = vshrl.u32 %v349, 7
        %v351 = vsub.s32 0, %v350
        %v352 = vrot.slane %v272, %v351
        %v353 = vmul.f32 %v348, %v352
        %v354 = vlaneseq
        %v355 = vshrl.u32 %v354, 7
        %v356 = vsub.s32 0, %v355
        %v357 = vrot.slane %v273, %v356
        %v358 = vadd.f32 %v353, %v357
        %359 = vst.msk [vmem:[%s263] sm:$0xff] %vm290, %v358
        %s360 = sand.u32 %s126, 1
        %s361 = scalar_lea.sflag [#allocation4], %s360
        %s362 = sand.u32 %s126, 1
        %s363 = smul.addr %s362, 8
        %s364 = scalar_lea.vmem [#allocation8], %s363
        // Predicated region
        $region49: #{tpu_custom_call.1} parent=35 // pred_check
          %p365 = pneg %p136
        $region50: #{tpu_custom_call.1} parent=35 // pred_check_branch
          %367 = sbr.rel (%p365) target = $region52
        $region51: #{tpu_custom_call.1} parent=35 // pred_region
          %s369 = ssub.s32 128, 128
          %370 = vsyncadd %s361, %s369
          %s371 = smul.addr %s24, 128
          %s372 = scalar_lea.hbm %s4, %s371
          %s374 = sshll.u32 %s364, 4
          %s375 = int_to_ptr.vmem [resolvable:$true] %s374
          %377 = dma.vmem_to_hbm [thread:$0]  %s375, 128, %s372, %s361
        $region52: #{tpu_custom_call.1} parent=35 // pred_fallthru
          _
      $region36: #{tpu_custom_call.1} parent=5 // pred_fallthru
        _
      %p378 = scmp.le.s32.totalorder 2, %s19
      // Predicated region
      $region53: #{tpu_custom_call.1} parent=5 // pred_check
        %p379 = pneg %p378
      $region54: #{tpu_custom_call.1} parent=5 // pred_check_branch
        %381 = sbr.rel (%p379) target = $region56
      $region55: #{tpu_custom_call.1} parent=5 // pred_region
        %s382 = ssub.s32 %s19, 2
        // Predicated region
        $region57: #{tpu_custom_call.1} parent=55 // pred_check
          %p383 = pneg %p142
        $region58: #{tpu_custom_call.1} parent=55 // pred_check_branch
          %385 = sbr.rel (%p383) target = $region60
        $region59: #{tpu_custom_call.1} parent=55 // pred_region
          %s386 = sand.u32 %s127, 1
          %s387 = scalar_lea.sflag [#allocation4], %s386
          %s388 = sand.u32 %s127, 1
          %s389 = smul.addr %s388, 8
          %s390 = scalar_lea.vmem [#allocation8], %s389
          %391 = dma.done %s387, 128
        $region60: #{tpu_custom_call.1} parent=55 // pred_fallthru
          _
      $region56: #{tpu_custom_call.1} parent=5 // pred_fallthru
        _
    $region6: #{tpu_custom_call.1} parent=1 // loop_footer
      %s23 = sadd.s32 1, %s19
    $region7: #{tpu_custom_call.1} parent=1 // loop_footer_branch
      %18 = sbr.rel target = $region3
    $region8: #{tpu_custom_call.1} parent=1 // loop_exit
      _
    %392 = vsyncpa [#allocation3], 1
    %s393 = scalar_lea.sflag [#allocation3], 1
    %394 = vsyncpa %s393, 1
    %395 = vsyncpa [#allocation6], 1
    %s396 = scalar_lea.sflag [#allocation6], 1
    %397 = vsyncpa %s396, 1
    %398 = vsyncpa [#allocation4], 1
    %s399 = scalar_lea.sflag [#allocation4], 1
    %400 = vsyncpa %s399, 1

</llo_original>
